<compile_context>
chip_gen: v5e
topology: v5e:2x2
jax: 0.10.0
libtpu: 0.0.40
codegen_flags: <defaults>
</compile_context>

<pallas_src>
import functools

import jax
import jax.numpy as jnp
from jax import lax
from jax.experimental import pallas as pl
from jax.experimental.pallas import tpu as pltpu

_GN_EPS = 1e-5                               # nn.GroupNorm default
_FUSED_SLAB_MAX_BYTES = 6 * 1024 * 1024      # f32 bytes of one per-grid-step x slab
_TILE_MAX_BYTES = 4 * 1024 * 1024            # f32 bytes of one x tile (tiled path)
_VMEM_CAP = 48 * 1024 * 1024                 # stay well under v7x's 64 MiB physical VMEM


# ----------------------------------------------------------------------------
# helpers
# ----------------------------------------------------------------------------
def _vmem_budget(in_bytes, out_bytes, f32_bytes, extra=0):
    """Scoped-VMEM request: double-buffered in/out tiles + f32 temporaries + margin."""
    need = 2 * in_bytes + 2 * out_bytes + 2 * f32_bytes + extra + (2 << 20)
    return int(min(max(need, 8 << 20), _VMEM_CAP))


def _sublane_multiple(dtype):
    """Required second-to-last block-dim multiple: 8 (f32), 16 (bf16), 32 (int8/fp8)."""
    itemsize = jnp.dtype(dtype).itemsize
    return 8 * max(1, 4 // itemsize)


def _group_masks(C, G):
    """Constant group-mix matrices: m_gc (G, C) sums channels->groups, m_cg = m_gc.T."""
    cg = C // G
    gid = jnp.arange(C) // cg
    m_gc = (gid[None, :] == jnp.arange(G)[:, None]).astype(jnp.float32)   # (G, C)
    return m_gc, m_gc.T                                                    # (G,C), (C,G)


def _pick_tile_t(T, C):
    """Multiple-of-128 lane tile with ~_TILE_MAX_BYTES f32 footprint (>= 128)."""
    max_rows = max(128, (_TILE_MAX_BYTES // (4 * C)) // 128 * 128)
    t_up = ((T + 127) // 128) * 128
    return int(min(t_up, max_rows))


# ----------------------------------------------------------------------------
# PRIMARY: fused kernel tiled over (B, G) groups -- single read / single write,
# no group-mix matmuls, parallel over batch AND groups.
# ----------------------------------------------------------------------------
def _gn_group_fused_kernel(x_ref, gamma_ref, beta_ref, o_ref, *, n, eps):
    x = x_ref[0].astype(jnp.float32)                          # (Cg, T)
    s1c = jnp.sum(x, axis=-1, keepdims=True)                  # (Cg, 1)
    s2c = jnp.sum(x * x, axis=-1, keepdims=True)              # (Cg, 1)
    s1 = jnp.sum(s1c, axis=0, keepdims=True)                  # (1, 1)
    s2 = jnp.sum(s2c, axis=0, keepdims=True)                  # (1, 1)
    mean = s1 * (1.0 / n)
    var = jnp.maximum(s2 * (1.0 / n) - mean * mean, 0.0)
    rstd = lax.rsqrt(var + eps)
    scale = gamma_ref[...] * rstd                              # (Cg, 1)
    shift = beta_ref[...] - mean * scale
    o_ref[0] = (x * scale + shift).astype(o_ref.dtype)


def _gn_group_fused(x, gamma, beta, num_groups, eps):
    B, C, T = x.shape
    G = num_groups
    Cg = C // G
    gamma2 = gamma.reshape(C, 1).astype(jnp.float32)
    beta2 = beta.reshape(C, 1).astype(jnp.float32)
    itemsize = jnp.dtype(x.dtype).itemsize
    slab_in = itemsize * Cg * T
    slab_f32 = 4 * Cg * T
    kern = functools.partial(_gn_group_fused_kernel, n=float(Cg * T), eps=eps)
    return pl.pallas_call(
        kern,
        out_shape=jax.ShapeDtypeStruct((B, C, T), x.dtype),
        grid_spec=pltpu.PrefetchScalarGridSpec(
            num_scalar_prefetch=0,
            grid=(B, G),
            in_specs=[
                pl.BlockSpec((1, Cg, T), lambda b, g: (b, g, 0)),
                pl.BlockSpec((Cg, 1), lambda b, g: (g, 0)),
                pl.BlockSpec((Cg, 1), lambda b, g: (g, 0)),
            ],
            out_specs=pl.BlockSpec((1, Cg, T), lambda b, g: (b, g, 0)),
        ),
        compiler_params=pltpu.CompilerParams(
            dimension_semantics=("parallel", "parallel"),
            vmem_limit_bytes=_vmem_budget(slab_in, slab_in, slab_f32),
        ),
    )(x, gamma2, beta2)


# ----------------------------------------------------------------------------
# Fallback: whole-C fused kernel (grid over batch only; tiny group-mix matmuls).
# Used when C//G is not sublane-aligned but the full (C, T) slab is small.
# ----------------------------------------------------------------------------
def _gn_fused_kernel(x_ref, gamma_ref, beta_ref, mgc_ref, mcg_ref, o_ref, *, n, eps):
    x = x_ref[0].astype(jnp.float32)                         # (C, T)
    s1 = jnp.sum(x, axis=-1, keepdims=True)                  # (C, 1)
    s2 = jnp.sum(x * x, axis=-1, keepdims=True)              # (C, 1)
    g1 = jnp.dot(mgc_ref[...], s1, preferred_element_type=jnp.float32)   # (G, 1)
    g2 = jnp.dot(mgc_ref[...], s2, preferred_element_type=jnp.float32)   # (G, 1)
    mean_g = g1 * (1.0 / n)
    var_g = jnp.maximum(g2 * (1.0 / n) - mean_g * mean_g, 0.0)
    rstd_g = lax.rsqrt(var_g + eps)
    mean_c = jnp.dot(mcg_ref[...], mean_g, preferred_element_type=jnp.float32)  # (C,1)
    rstd_c = jnp.dot(mcg_ref[...], rstd_g, preferred_element_type=jnp.float32)  # (C,1)
    scale = gamma_ref[...] * rstd_c                          # (C, 1)
    shift = beta_ref[...] - mean_c * scale
    o_ref[0] = (x * scale + shift).astype(o_ref.dtype)


def _gn_fused(x, gamma, beta, num_groups, eps):
    B, C, T = x.shape
    G = num_groups
    m_gc, m_cg = _group_masks(C, G)
    itemsize = jnp.dtype(x.dtype).itemsize
    slab_in = itemsize * C * T
    slab_f32 = 4 * C * T
    kern = functools.partial(_gn_fused_kernel, n=float((C // G) * T), eps=eps)
    return pl.pallas_call(
        kern,
        out_shape=jax.ShapeDtypeStruct((B, C, T), x.dtype),
        grid_spec=pltpu.PrefetchScalarGridSpec(
            num_scalar_prefetch=0,
            grid=(B,),
            in_specs=[
                pl.BlockSpec((1, C, T), lambda b: (b, 0, 0)),
                pl.BlockSpec((C, 1), lambda b: (0, 0)),
                pl.BlockSpec((C, 1), lambda b: (0, 0)),
                pl.BlockSpec((G, C), lambda b: (0, 0)),
                pl.BlockSpec((C, G), lambda b: (0, 0)),
            ],
            out_specs=pl.BlockSpec((1, C, T), lambda b: (b, 0, 0)),
        ),
        compiler_params=pltpu.CompilerParams(
            dimension_semantics=("parallel",),
            vmem_limit_bytes=_vmem_budget(slab_in, slab_in, slab_f32),
        ),
    )(x, gamma.reshape(C, 1).astype(jnp.float32),
      beta.reshape(C, 1).astype(jnp.float32), m_gc, m_cg)


# ----------------------------------------------------------------------------
# Fallback for very long T: tiled two-pass path.
# Pass 1 accumulates per-channel sums over T tiles and FINALIZES into packed
# per-channel scale/shift (B, 2, C, 1); pass 2 is pure elementwise apply.
# ----------------------------------------------------------------------------
def _gn_stats_kernel(x_ref, mgc_ref, mcg_ref, gamma_ref, beta_ref, ss_ref,
                     s1_ref, s2_ref, *, n, eps):
    t = pl.program_id(1)

    @pl.when(t == 0)
    def _():
        s1_ref[...] = jnp.zeros_like(s1_ref)
        s2_ref[...] = jnp.zeros_like(s2_ref)

    x = x_ref[0].astype(jnp.float32)                         # (C, Tt)
    s1_ref[...] += jnp.sum(x, axis=-1, keepdims=True)        # (C, 1)
    s2_ref[...] += jnp.sum(x * x, axis=-1, keepdims=True)

    @pl.when(t == pl.num_programs(1) - 1)
    def _():
        g1 = jnp.dot(mgc_ref[...], s1_ref[...], preferred_element_type=jnp.float32)
        g2 = jnp.dot(mgc_ref[...], s2_ref[...], preferred_element_type=jnp.float32)
        mean_g = g1 * (1.0 / n)
        var_g = jnp.maximum(g2 * (1.0 / n) - mean_g * mean_g, 0.0)
        rstd_g = lax.rsqrt(var_g + eps)
        mean_c = jnp.dot(mcg_ref[...], mean_g, preferred_element_type=jnp.float32)
        rstd_c = jnp.dot(mcg_ref[...], rstd_g, preferred_element_type=jnp.float32)
        scale = gamma_ref[...] * rstd_c                      # (C, 1)
        ss_ref[0, 0] = scale
        ss_ref[0, 1] = beta_ref[...] - mean_c * scale


def _gn_apply_kernel(x_ref, ss_ref, o_ref):
    x = x_ref[0].astype(jnp.float32)                         # (C, Tt)
    scale = ss_ref[0, 0]                                     # (C, 1)
    shift = ss_ref[0, 1]                                     # (C, 1)
    o_ref[0] = (x * scale + shift).astype(o_ref.dtype)


def _gn_tiled(x, gamma, beta, num_groups, eps, tile_t):
    B, C, T = x.shape
    G = num_groups
    nT = -(-T // tile_t)
    T_pad = nT * tile_t
    if T_pad != T:
        # Zero padding leaves sum / sum-sq untouched; n below uses the true T.
        x = jnp.pad(x, ((0, 0), (0, 0), (0, T_pad - T)))

    m_gc, m_cg = _group_masks(C, G)
    gamma2 = gamma.reshape(C, 1).astype(jnp.float32)
    beta2 = beta.reshape(C, 1).astype(jnp.float32)
    itemsize = jnp.dtype(x.dtype).itemsize
    tile_in = itemsize * C * tile_t
    tile_f32 = 4 * C * tile_t

    # Pass 1: per-(batch, channel) scale / shift, accumulated across T tiles.
    # TODO(synk): for B=1 on v7x this pass runs on one TensorCore; splitting T into
    # two parallel halves with a tiny combine would recover megacore here.
    ss = pl.pallas_call(
        functools.partial(_gn_stats_kernel, n=float((C // G) * T), eps=eps),
        out_shape=jax.ShapeDtypeStruct((B, 2, C, 1), jnp.float32),
        grid_spec=pltpu.PrefetchScalarGridSpec(
            num_scalar_prefetch=0,
            grid=(B, nT),
            in_specs=[
                pl.BlockSpec((1, C, tile_t), lambda b, t: (b, 0, t)),
                pl.BlockSpec((G, C), lambda b, t: (0, 0)),
                pl.BlockSpec((C, G), lambda b, t: (0, 0)),
                pl.BlockSpec((C, 1), lambda b, t: (0, 0)),
                pl.BlockSpec((C, 1), lambda b, t: (0, 0)),
            ],
            out_specs=pl.BlockSpec((1, 2, C, 1), lambda b, t: (b, 0, 0, 0)),
            scratch_shapes=[pltpu.VMEM((C, 1), jnp.float32),
                            pltpu.VMEM((C, 1), jnp.float32)],
        ),
        compiler_params=pltpu.CompilerParams(
            dimension_semantics=("parallel", "arbitrary"),
            vmem_limit_bytes=_vmem_budget(tile_in, 8 * C, tile_f32),
        ),
    )(x, m_gc, m_cg, gamma2, beta2)

    # Pass 2: elementwise normalize + affine, lane-dense over T tiles.
    y = pl.pallas_call(
        _gn_apply_kernel,
        out_shape=jax.ShapeDtypeStruct((B, C, T_pad), x.dtype),
        grid_spec=pltpu.PrefetchScalarGridSpec(
            num_scalar_prefetch=0,
            grid=(B, nT),
            in_specs=[
                pl.BlockSpec((1, C, tile_t), lambda b, t: (b, 0, t)),
                pl.BlockSpec((1, 2, C, 1), lambda b, t: (b, 0, 0, 0)),
            ],
            out_specs=pl.BlockSpec((1, C, tile_t), lambda b, t: (b, 0, t)),
        ),
        compiler_params=pltpu.CompilerParams(
            dimension_semantics=("parallel", "parallel"),
            vmem_limit_bytes=_vmem_budget(tile_in, tile_in, tile_f32),
        ),
    )(x, ss)
    return y if T_pad == T else y[..., :T]


# ----------------------------------------------------------------------------
# public wrappers (module semantics)
# ----------------------------------------------------------------------------
def cached_group_norm(x, gamma, beta, num_groups, *, eps=_GN_EPS, tile_t=None):
    """CachedGroupNorm.forward with stream=False  (== nn.GroupNorm over (B, C, ...))."""
    orig_shape = x.shape
    if x.ndim == 4:                       # (B, C, H, T): GroupNorm is spatially agnostic
        B4, C4, H4, T4 = x.shape
        x = x.reshape(B4, C4, H4 * T4)
    assert x.ndim == 3, "expected (B, C, T) or (B, C, H, T)"
    B, C, T = x.shape
    G = num_groups
    assert C % G == 0, "num_channels must be divisible by num_groups"
    Cg = C // G

    if tile_t is not None and tile_t > 0:             # explicit tiled override
        tile_t = ((int(tile_t) + 127) // 128) * 128
        return _gn_tiled(x, gamma, beta, G, eps, tile_t).reshape(orig_shape)

    sub = _sublane_multiple(x.dtype)
    group_slab_f32 = 4 * Cg * T
    full_slab_f32 = 4 * C * T

    if (Cg % sub == 0 or G == 1) and group_slab_f32 <= _FUSED_SLAB_MAX_BYTES:
        y = _gn_group_fused(x, gamma, beta, G, eps)      # primary path
    elif full_slab_f32 <= _FUSED_SLAB_MAX_BYTES:
        y = _gn_fused(x, gamma, beta, G, eps)            # small-slab fallback
    else:
        y = _gn_tiled(x, gamma, beta, G, eps, _pick_tile_t(T, C))
    return y.reshape(orig_shape)


def cached_group_norm_stream(x, pad_cache, gamma, beta, num_groups, *, eps=_GN_EPS):
    """Functional CachedGroupNorm.forward with stream=True.

    pad_cache: (cache_batch, C, pad_T) buffer (zeros on first call, matching init_cache).
    Returns (y, new_pad_cache).  The cache concat/roll is plain-JAX glue; GroupNorm
    itself runs through the Pallas kernels above.
    """
    B = x.shape[0]
    assert B <= pad_cache.shape[0], "batch exceeds cache capacity"
    pad_T = pad_cache.shape[-1]
    xp = jnp.concatenate([pad_cache[:B].astype(x.dtype), x], axis=-1)
    new_cache = pad_cache.at[:B].set(xp[..., -pad_T:].astype(pad_cache.dtype))
    y = cached_group_norm(xp, gamma, beta, num_groups, eps=eps)
    return y[..., -x.shape[-1]:], new_cache


# ----------------------------------------------------------------------------
# reference + demo
# ----------------------------------------------------------------------------
def _group_norm_ref(x, gamma, beta, G, eps):
    B, C, T = x.shape
    xg = x.reshape(B, G, (C // G) * T).astype(jnp.float32)
    mean = xg.mean(-1, keepdims=True)
    var = ((xg - mean) ** 2).mean(-1, keepdims=True)
    xn = ((xg - mean) / jnp.sqrt(var + eps)).reshape(B, C, T)
    return (xn * gamma[None, :, None] + beta[None, :, None]).astype(x.dtype)


if __name__ == "__main__":
    key = jax.random.PRNGKey(0)
    ks = jax.random.split(key, 8)

    # 1) whole-C fused fallback (C//G = 2 not sublane-aligned, tiny slab)
    B, C, T, G = 2, 8, 256, 4
    x1 = jax.random.normal(ks[0], (B, C, T), jnp.float32) * 2.0 + 0.5
    g1 = 1.0 + 0.1 * jax.random.normal(ks[1], (C,), jnp.float32)
    b1 = 0.1 * jax.random.normal(ks[2], (C,), jnp.float32)
    y1 = jax.block_until_ready(cached_group_norm(x1, g1, b1, G))
    assert y1.shape == x1.shape
    assert bool(jnp.allclose(y1, _group_norm_ref(x1, g1, b1, G, _GN_EPS), atol=1e-3, rtol=1e-3))

    # 2) primary group-tiled fused path (C//G = 8, grid=(B, G))
    B, C, T, G = 2, 16, 256, 2
    x2 = jax.random.normal(ks[3], (B, C, T), jnp.float32) * 3.0 - 1.0
    g2 = 1.0 + 0.1 * jax.random.normal(ks[4], (C,), jnp.float32)
    b2 = 0.1 * jax.random.normal(ks[5], (C,), jnp.float32)
    y2 = jax.block_until_ready(cached_group_norm(x2, g2, b2, G))
    assert bool(jnp.allclose(y2, _group_norm_ref(x2, g2, b2, G, _GN_EPS), atol=1e-3, rtol=1e-3))

    # 3) tiled two-pass path with zero-padded, non-128-divisible T (forced via tile_t)
    x3 = jax.random.normal(ks[6], (B, C, 200), jnp.float32)
    y3 = jax.block_until_ready(cached_group_norm(x3, g2, b2, G, tile_t=128))
    assert y3.shape == x3.shape
    assert bool(jnp.allclose(y3, _group_norm_ref(x3, g2, b2, G, _GN_EPS), atol=1e-3, rtol=1e-3))

    # 4) 4-D input (B, C, H, T) -- flattened spatial dims
    x4 = jax.random.normal(ks[7], (2, 4, 16, 16), jnp.float32)
    g4 = jnp.ones((4,), jnp.float32)
    b4 = jnp.zeros((4,), jnp.float32)
    y4 = jax.block_until_ready(cached_group_norm(x4, g4, b4, 2))
    ref4 = _group_norm_ref(x4.reshape(2, 4, 256), g4, b4, 2, _GN_EPS).reshape(x4.shape)
    assert y4.shape == x4.shape
    assert bool(jnp.allclose(y4, ref4, atol=1e-3, rtol=1e-3))

    # 5) bf16 input through the group-fused path (stats in f32)
    xb = jax.random.normal(ks[0], (2, 32, 256), jnp.float32).astype(jnp.bfloat16)
    gb = jnp.ones((32,), jnp.float32)
    bb = jnp.zeros((32,), jnp.float32)
    yb = jax.block_until_ready(cached_group_norm(xb, gb, bb, 2))
    refb = _group_norm_ref(xb.astype(jnp.float32), gb, bb, 2, _GN_EPS)
    assert yb.dtype == jnp.bfloat16
    assert bool(jnp.allclose(yb.astype(jnp.float32), refb, atol=5e-2, rtol=5e-2))

    # 6) functional streaming step (stream=True semantics, cache passed explicitly)
    C_s, G_s, T_s, pad_T = 16, 2, 16, 16
    x_s = jax.random.normal(ks[3], (2, C_s, T_s), jnp.float32)
    pad_cache = jnp.zeros((4, C_s, pad_T), jnp.float32)        # fresh cache == zeros
    y_s, new_cache = cached_group_norm_stream(x_s, pad_cache, g2, b2, G_s)
    y_s = jax.block_until_ready(y_s)
    ref_s = _group_norm_ref(jnp.concatenate([pad_cache[:2], x_s], -1),
                            g2, b2, G_s, _GN_EPS)[..., -T_s:]
    assert y_s.shape == x_s.shape and new_cache.shape == pad_cache.shape
    assert bool(jnp.allclose(y_s, ref_s, atol=1e-3, rtol=1e-3))
    assert bool(jnp.all(jnp.isfinite(y_s)))

    print("KERNEL_OK")
</pallas_src>

<mosaic_0001>
module attributes {stable_mosaic.version = 11 : i64} {
  func.func @_gn_fused_kernel(%arg0: i32, %arg1: memref<1x8x256xf32, #tpu.memory_space<vmem>>, %arg2: memref<8x1xf32, #tpu.memory_space<vmem>>, %arg3: memref<8x1xf32, #tpu.memory_space<vmem>>, %arg4: memref<4x8xf32, #tpu.memory_space<vmem>>, %arg5: memref<8x4xf32, #tpu.memory_space<vmem>>, %arg6: memref<1x8x256xf32, #tpu.memory_space<vmem>>) attributes {dimension_semantics = [#tpu.dimension_semantics<parallel>], iteration_bounds = array<i64: 2>, scalar_prefetch = 0 : i64, scratch_operands = 0 : i64, tpu.core_type = #tpu.core_type<tc>, window_params = [{transform_indices = @transform_0, window_bounds = array<i64: 1, 8, 256>}, {pipeline_mode = #tpu.pipeline_mode<synchronous>, transform_indices = @transform_1, window_bounds = array<i64: 8, 1>}, {pipeline_mode = #tpu.pipeline_mode<synchronous>, transform_indices = @transform_2, window_bounds = array<i64: 8, 1>}, {pipeline_mode = #tpu.pipeline_mode<synchronous>, transform_indices = @transform_3, window_bounds = array<i64: 4, 8>}, {pipeline_mode = #tpu.pipeline_mode<synchronous>, transform_indices = @transform_4, window_bounds = array<i64: 8, 4>}, {transform_indices = @transform_5, window_bounds = array<i64: 1, 8, 256>}]} {
    %c0 = arith.constant 0 : index
    %c0_0 = arith.constant 0 : index
    %c0_1 = arith.constant 0 : index
    %0 = vector.load %arg1[%c0, %c0_0, %c0_1] : memref<1x8x256xf32, #tpu.memory_space<vmem>>, vector<1x8x256xf32>
    %1 = vector.shape_cast %0 : vector<1x8x256xf32> to vector<8x256xf32>
    %cst = arith.constant dense<0.000000e+00> : vector<8xf32>
    %2 = vector.multi_reduction <add>, %1, %cst [1] : vector<8x256xf32> to vector<8xf32>
    %3 = vector.shape_cast %2 : vector<8xf32> to vector<8x1xf32>
    %4 = arith.mulf %1, %1 : vector<8x256xf32>
    %cst_2 = arith.constant dense<0.000000e+00> : vector<8xf32>
    %5 = vector.multi_reduction <add>, %4, %cst_2 [1] : vector<8x256xf32> to vector<8xf32>
    %6 = vector.shape_cast %5 : vector<8xf32> to vector<8x1xf32>
    %c0_3 = arith.constant 0 : index
    %c0_4 = arith.constant 0 : index
    %7 = vector.load %arg4[%c0_3, %c0_4] : memref<4x8xf32, #tpu.memory_space<vmem>>, vector<4x8xf32>
    %cst_5 = arith.constant dense<0.000000e+00> : vector<4x1xf32>
    %8 = tpu.matmul %7, %3, %cst_5 {dimension_numbers = #tpu.dot_dimension_numbers<[1], [0], [0], [1], [0, 0, 1, 1], [], []>} : vector<4x8xf32>, vector<8x1xf32>, vector<4x1xf32> -> vector<4x1xf32>
    %c0_6 = arith.constant 0 : index
    %c0_7 = arith.constant 0 : index
    %9 = vector.load %arg4[%c0_6, %c0_7] : memref<4x8xf32, #tpu.memory_space<vmem>>, vector<4x8xf32>
    %cst_8 = arith.constant dense<0.000000e+00> : vector<4x1xf32>
    %10 = tpu.matmul %9, %6, %cst_8 {dimension_numbers = #tpu.dot_dimension_numbers<[1], [0], [0], [1], [0, 0, 1, 1], [], []>} : vector<4x8xf32>, vector<8x1xf32>, vector<4x1xf32> -> vector<4x1xf32>
    %cst_9 = arith.constant 0.001953125 : f32
    %11 = vector.broadcast %cst_9 : f32 to vector<4x1xf32>
    %12 = arith.mulf %8, %11 : vector<4x1xf32>
    %cst_10 = arith.constant 0.001953125 : f32
    %13 = vector.broadcast %cst_10 : f32 to vector<4x1xf32>
    %14 = arith.mulf %10, %13 : vector<4x1xf32>
    %15 = arith.mulf %12, %12 : vector<4x1xf32>
    %16 = arith.subf %14, %15 : vector<4x1xf32>
    %cst_11 = arith.constant 0.000000e+00 : f32
    %17 = vector.broadcast %cst_11 : f32 to vector<4x1xf32>
    %18 = arith.maximumf %16, %17 : vector<4x1xf32>
    %cst_12 = arith.constant 9.99999974E-6 : f32
    %19 = vector.broadcast %cst_12 : f32 to vector<4x1xf32>
    %20 = arith.addf %18, %19 : vector<4x1xf32>
    %21 = math.rsqrt %20 : vector<4x1xf32>
    %c0_13 = arith.constant 0 : index
    %c0_14 = arith.constant 0 : index
    %22 = vector.load %arg5[%c0_13, %c0_14] : memref<8x4xf32, #tpu.memory_space<vmem>>, vector<8x4xf32>
    %cst_15 = arith.constant dense<0.000000e+00> : vector<8x1xf32>
    %23 = tpu.matmul %22, %12, %cst_15 {dimension_numbers = #tpu.dot_dimension_numbers<[1], [0], [0], [1], [0, 0, 1, 1], [], []>} : vector<8x4xf32>, vector<4x1xf32>, vector<8x1xf32> -> vector<8x1xf32>
    %c0_16 = arith.constant 0 : index
    %c0_17 = arith.constant 0 : index
    %24 = vector.load %arg5[%c0_16, %c0_17] : memref<8x4xf32, #tpu.memory_space<vmem>>, vector<8x4xf32>
    %cst_18 = arith.constant dense<0.000000e+00> : vector<8x1xf32>
    %25 = tpu.matmul %24, %21, %cst_18 {dimension_numbers = #tpu.dot_dimension_numbers<[1], [0], [0], [1], [0, 0, 1, 1], [], []>} : vector<8x4xf32>, vector<4x1xf32>, vector<8x1xf32> -> vector<8x1xf32>
    %c0_19 = arith.constant 0 : index
    %c0_20 = arith.constant 0 : index
    %26 = vector.load %arg2[%c0_19, %c0_20] : memref<8x1xf32, #tpu.memory_space<vmem>>, vector<8x1xf32>
    %27 = arith.mulf %26, %25 : vector<8x1xf32>
    %c0_21 = arith.constant 0 : index
    %c0_22 = arith.constant 0 : index
    %28 = vector.load %arg3[%c0_21, %c0_22] : memref<8x1xf32, #tpu.memory_space<vmem>>, vector<8x1xf32>
    %29 = arith.mulf %23, %27 : vector<8x1xf32>
    %30 = arith.subf %28, %29 : vector<8x1xf32>
    %31 = vector.broadcast %27 : vector<8x1xf32> to vector<8x256xf32>
    %32 = arith.mulf %1, %31 : vector<8x256xf32>
    %33 = vector.broadcast %30 : vector<8x1xf32> to vector<8x256xf32>
    %34 = arith.addf %32, %33 : vector<8x256xf32>
    %c0_23 = arith.constant 0 : index
    %c0_24 = arith.constant 0 : index
    %c0_25 = arith.constant 0 : index
    %35 = vector.load %arg6[%c0_23, %c0_24, %c0_25] : memref<1x8x256xf32, #tpu.memory_space<vmem>>, vector<1x8x256xf32>
    %36 = vector.shape_cast %35 : vector<1x8x256xf32> to vector<8x256xf32>
    %37 = vector.shape_cast %34 : vector<8x256xf32> to vector<1x8x256xf32>
    tpu.vector_store %arg6[%c0_23, %c0_24, %c0_25], %37 {strides = array<i32>} : memref<1x8x256xf32, #tpu.memory_space<vmem>>, vector<1x8x256xf32>,
    return
  }
  func.func @transform_0(%arg0: i32) -> (i32, i32, i32) {
    %c0_i32 = arith.constant 0 : i32
    %c0_i32_0 = arith.constant 0 : i32
    %c0_i32_1 = arith.constant 0 : i32
    return %arg0, %c0_i32, %c0_i32_0 : i32, i32, i32
  }
  func.func @transform_1(%arg0: i32) -> (i32, i32) {
    %c0_i32 = arith.constant 0 : i32
    %c0_i32_0 = arith.constant 0 : i32
    %c0_i32_1 = arith.constant 0 : i32
    return %c0_i32, %c0_i32_0 : i32, i32
  }
  func.func @transform_2(%arg0: i32) -> (i32, i32) {
    %c0_i32 = arith.constant 0 : i32
    %c0_i32_0 = arith.constant 0 : i32
    %c0_i32_1 = arith.constant 0 : i32
    return %c0_i32, %c0_i32_0 : i32, i32
  }
  func.func @transform_3(%arg0: i32) -> (i32, i32) {
    %c0_i32 = arith.constant 0 : i32
    %c0_i32_0 = arith.constant 0 : i32
    %c0_i32_1 = arith.constant 0 : i32
    return %c0_i32, %c0_i32_0 : i32, i32
  }
  func.func @transform_4(%arg0: i32) -> (i32, i32) {
    %c0_i32 = arith.constant 0 : i32
    %c0_i32_0 = arith.constant 0 : i32
    %c0_i32_1 = arith.constant 0 : i32
    return %c0_i32, %c0_i32_0 : i32, i32
  }
  func.func @transform_5(%arg0: i32) -> (i32, i32, i32) {
    %c0_i32 = arith.constant 0 : i32
    %c0_i32_0 = arith.constant 0 : i32
    %c0_i32_1 = arith.constant 0 : i32
    return %arg0, %c0_i32, %c0_i32_0 : i32, i32, i32
  }
}

</mosaic_0001>

<llo_original>
// kernel: tpu_custom_call.1
$region0: #{tpu_custom_call.1}
  #allocation0 [shape = 'u32[]', space=smem, size = 0x4, offset = 0x4, fixed_abs, tag = 'smem constant byte address 0x4 - core index']
  #allocation1 [shape = 'u32[72,128]{1,0:T(1,128)}', space=vmem, size = 0x9000, scoped, tag = 'internal scratch']
  %s0 = inlined_call_operand.hbm [shape: f32[2,8,256], index: 0, kind: input, shape index: {}]
  %s1 = inlined_call_operand.vmem [shape: f32[8,1], index: 1, kind: input, shape index: {}]
  %s2 = inlined_call_operand.vmem [shape: f32[8,1], index: 2, kind: input, shape index: {}]
  %s3 = inlined_call_operand.vmem [shape: f32[4,8], index: 3, kind: input, shape index: {}]
  %s4 = inlined_call_operand.vmem [shape: f32[8,4], index: 4, kind: input, shape index: {}]
  %s5 = inlined_call_operand.hbm [shape: f32[2,8,256], index: 5, kind: output, shape index: {}]
  %s6 = sld [smem:[#allocation0]]
  $region57: #{tpu_custom_call.1} parent=0
    _
  %s8 = ssub.s32 1, %s6
  %s9 = scalar_select 0, %s8, %s6
  $region1: #{tpu_custom_call.1} parent=0
    #allocation2 [shape = 'u8[16384]{0}', space=vmem, size = 0x4000, scoped, tag = 'input window, operand 0']
    #allocation3 [shape = 's32[2]{0}', space=sflag, size = 0x8, scoped, tag = 'scoped memory for tpu_custom_call.1']
    #allocation4 [shape = 's32[2]{0}', space=sflag, size = 0x8, scoped, tag = 'scoped memory for tpu_custom_call.1']
    #allocation5 [shape = 'u8[16384]{0}', space=vmem, size = 0x4000, scoped, tag = 'output window, operand 0']
    %10 = vsyncpa [#allocation3], 0
    %s11 = scalar_lea.sflag [#allocation3], 1
    %12 = vsyncpa %s11, 0
    %13 = vsyncpa [#allocation4], 0
    %s14 = scalar_lea.sflag [#allocation4], 1
    %15 = vsyncpa %s14, 0
    loop: start=0, step=1, limit=4
    $region2: #{tpu_custom_call.1} parent=1 // loop_pre_header
      _
    $region3: #{tpu_custom_call.1} parent=1 // loop_header
      %s17 = sphi 0, %s21
      %p18 = scmp.ge.s32.totalorder %s17, 4
      %s27 = sphi 0, %s29
      %s30 = sphi 0, %s27
      %s31 = sphi 0, %s30
      %s47 = sphi 0, %s31
      %s51 = sphi 0, %s51
      %s53 = sphi 0, %s51
      %s54 = sphi 0, %s53
      %s68 = sphi 0, %s54
      %s72 = sphi 0, %s72
      %s74 = sphi 0, %s72
      %s75 = sphi 0, %s74
      %s89 = sphi 0, %s75
      %s93 = sphi 0, %s93
      %s95 = sphi 0, %s93
      %s96 = sphi 0, %s95
      %s110 = sphi 0, %s96
      %s114 = sphi 0, %s114
      %s116 = sphi 0, %s114
      %s117 = sphi 0, %s116
      %s131 = sphi 0, %s117
      %s137 = sphi 0, %s139
      %s140 = sphi 0, %s137
      %s141 = sphi 0, %s140
      %s157 = sphi 0, %s141
    $region4: #{tpu_custom_call.1} parent=1 // loop_header_branch
      %20 = sbr.rel (%p18) target = $region8
    $region5: #{tpu_custom_call.1} parent=1 // loop_body
      %s22 = ssub.s32 %s17, 1
      %s23 = ssub.s32 %s17, 2
      %s24 = sadd.s32 %s17, 1
      %s25 = ssub.s32 %s17, %s24
      %p26 = scmp.eq.s32.totalorder %s25, 0
      %s28 = sadd.s32 %s27, 1
      %s29 = scalar_select %p26, %s27, %s28
      %p32 = pneg %p26
      %p33 = scmp.eq.s32.totalorder %s17, 1
      %p34 = por %p32, %p33
      %p35 = scmp.ne.s32.totalorder %s27, %s30
      %p36 = scmp.eq.s32.totalorder %s17, 0
      %p37 = por %p35, %p36
      %p38 = scmp.ne.s32.totalorder %s27, %s30
      %p39 = scmp.eq.s32.totalorder %s22, 1
      %p40 = por %p38, %p39
      %p41 = scmp.ne.s32.totalorder %s30, %s31
      %p42 = scmp.eq.s32.totalorder %s22, 0
      %p43 = por %p41, %p42
      %p44 = scmp.ne.s32.totalorder %s30, %s31
      %p45 = scmp.eq.s32.totalorder %s23, 1
      %p46 = por %p44, %p45
      %p48 = scmp.ne.s32.totalorder %s31, %s47
      %p49 = scmp.eq.s32.totalorder %s23, 0
      %p50 = por %p48, %p49
      %s52 = sadd.s32 %s51, 1
      %p55 = scmp.eq.s32.totalorder %s17, 1
      %p56 = scmp.ne.s32.totalorder %s51, %s53
      %p57 = scmp.eq.s32.totalorder %s17, 0
      %p58 = por %p56, %p57
      %p59 = scmp.ne.s32.totalorder %s51, %s53
      %p60 = scmp.eq.s32.totalorder %s22, 1
      %p61 = por %p59, %p60
      %p62 = scmp.ne.s32.totalorder %s53, %s54
      %p63 = scmp.eq.s32.totalorder %s22, 0
      %p64 = por %p62, %p63
      %p65 = scmp.ne.s32.totalorder %s53, %s54
      %p66 = scmp.eq.s32.totalorder %s23, 1
      %p67 = por %p65, %p66
      %p69 = scmp.ne.s32.totalorder %s54, %s68
      %p70 = scmp.eq.s32.totalorder %s23, 0
      %p71 = por %p69, %p70
      %s73 = sadd.s32 %s72, 1
      %p76 = scmp.eq.s32.totalorder %s17, 1
      %p77 = scmp.ne.s32.totalorder %s72, %s74
      %p78 = scmp.eq.s32.totalorder %s17, 0
      %p79 = por %p77, %p78
      %p80 = scmp.ne.s32.totalorder %s72, %s74
      %p81 = scmp.eq.s32.totalorder %s22, 1
      %p82 = por %p80, %p81
      %p83 = scmp.ne.s32.totalorder %s74, %s75
      %p84 = scmp.eq.s32.totalorder %s22, 0
      %p85 = por %p83, %p84
      %p86 = scmp.ne.s32.totalorder %s74, %s75
      %p87 = scmp.eq.s32.totalorder %s23, 1
      %p88 = por %p86, %p87
      %p90 = scmp.ne.s32.totalorder %s75, %s89
      %p91 = scmp.eq.s32.totalorder %s23, 0
      %p92 = por %p90, %p91
      %s94 = sadd.s32 %s93, 1
      %p97 = scmp.eq.s32.totalorder %s17, 1
      %p98 = scmp.ne.s32.totalorder %s93, %s95
      %p99 = scmp.eq.s32.totalorder %s17, 0
      %p100 = por %p98, %p99
      %p101 = scmp.ne.s32.totalorder %s93, %s95
      %p102 = scmp.eq.s32.totalorder %s22, 1
      %p103 = por %p101, %p102
      %p104 = scmp.ne.s32.totalorder %s95, %s96
      %p105 = scmp.eq.s32.totalorder %s22, 0
      %p106 = por %p104, %p105
      %p107 = scmp.ne.s32.totalorder %s95, %s96
      %p108 = scmp.eq.s32.totalorder %s23, 1
      %p109 = por %p107, %p108
      %p111 = scmp.ne.s32.totalorder %s96, %s110
      %p112 = scmp.eq.s32.totalorder %s23, 0
      %p113 = por %p111, %p112
      %s115 = sadd.s32 %s114, 1
      %p118 = scmp.eq.s32.totalorder %s17, 1
      %p119 = scmp.ne.s32.totalorder %s114, %s116
      %p120 = scmp.eq.s32.totalorder %s17, 0
      %p121 = por %p119, %p120
      %p122 = scmp.ne.s32.totalorder %s114, %s116
      %p123 = scmp.eq.s32.totalorder %s22, 1
      %p124 = por %p122, %p123
      %p125 = scmp.ne.s32.totalorder %s116, %s117
      %p126 = scmp.eq.s32.totalorder %s22, 0
      %p127 = por %p125, %p126
      %p128 = scmp.ne.s32.totalorder %s116, %s117
      %p129 = scmp.eq.s32.totalorder %s23, 1
      %p130 = por %p128, %p129
      %p132 = scmp.ne.s32.totalorder %s117, %s131
      %p133 = scmp.eq.s32.totalorder %s23, 0
      %p134 = por %p132, %p133
      %s135 = ssub.s32 %s17, %s24
      %p136 = scmp.eq.s32.totalorder %s135, 0
      %s138 = sadd.s32 %s137, 1
      %s139 = scalar_select %p136, %s137, %s138
      %p142 = pneg %p136
      %p143 = scmp.eq.s32.totalorder %s17, 1
      %p144 = por %p142, %p143
      %p145 = scmp.ne.s32.totalorder %s137, %s140
      %p146 = scmp.eq.s32.totalorder %s17, 0
      %p147 = por %p145, %p146
      %p148 = scmp.ne.s32.totalorder %s137, %s140
      %p149 = scmp.eq.s32.totalorder %s22, 1
      %p150 = por %p148, %p149
      %p151 = scmp.ne.s32.totalorder %s140, %s141
      %p152 = scmp.eq.s32.totalorder %s22, 0
      %p153 = por %p151, %p152
      %p154 = scmp.ne.s32.totalorder %s140, %s141
      %p155 = scmp.eq.s32.totalorder %s23, 1
      %p156 = por %p154, %p155
      %p158 = scmp.ne.s32.totalorder %s141, %s157
      %p159 = scmp.eq.s32.totalorder %s23, 0
      %p160 = por %p158, %p159
      %p161 = scmp.le.s32.totalorder 1, %s17
      %p162 = scmp.lt.s32.totalorder %s17, 3
      %p163 = pnand %p161, %p162
      %p164 = pneg %p163
      // Predicated region
      $region9: #{tpu_custom_call.1} parent=5 // pred_check
        _
      $region10: #{tpu_custom_call.1} parent=5 // pred_check_branch
        %166 = sbr.rel (%p163) target = $region12
      $region11: #{tpu_custom_call.1} parent=5 // pred_region
        %s167 = ssub.s32 %s17, 1
        // Predicated region
        $region13: #{tpu_custom_call.1} parent=11 // pred_check
          %p168 = pneg %p64
        $region14: #{tpu_custom_call.1} parent=11 // pred_check_branch
          %170 = sbr.rel (%p168) target = $region16
        $region15: #{tpu_custom_call.1} parent=11 // pred_region
          _
        $region16: #{tpu_custom_call.1} parent=11 // pred_fallthru
          _
        // Predicated region
        $region17: #{tpu_custom_call.1} parent=11 // pred_check
          %p171 = pneg %p85
        $region18: #{tpu_custom_call.1} parent=11 // pred_check_branch
          %173 = sbr.rel (%p171) target = $region20
        $region19: #{tpu_custom_call.1} parent=11 // pred_region
          _
        $region20: #{tpu_custom_call.1} parent=11 // pred_fallthru
          _
        // Predicated region
        $region21: #{tpu_custom_call.1} parent=11 // pred_check
          %p174 = pneg %p106
        $region22: #{tpu_custom_call.1} parent=11 // pred_check_branch
          %176 = sbr.rel (%p174) target = $region24
        $region23: #{tpu_custom_call.1} parent=11 // pred_region
          _
        $region24: #{tpu_custom_call.1} parent=11 // pred_fallthru
          _
        // Predicated region
        $region25: #{tpu_custom_call.1} parent=11 // pred_check
          %p177 = pneg %p127
        $region26: #{tpu_custom_call.1} parent=11 // pred_check_branch
          %179 = sbr.rel (%p177) target = $region28
        $region27: #{tpu_custom_call.1} parent=11 // pred_region
          _
        $region28: #{tpu_custom_call.1} parent=11 // pred_fallthru
          _
      $region12: #{tpu_custom_call.1} parent=5 // pred_fallthru
        _
      %p180 = scmp.lt.s32.totalorder %s17, 2
      // Predicated region
      $region29: #{tpu_custom_call.1} parent=5 // pred_check
        %p181 = pneg %p180
      $region30: #{tpu_custom_call.1} parent=5 // pred_check_branch
        %183 = sbr.rel (%p181) target = $region32
      $region31: #{tpu_custom_call.1} parent=5 // pred_region
        // Predicated region
        $region33: #{tpu_custom_call.1} parent=31 // pred_check
          %p184 = pneg %p37
        $region34: #{tpu_custom_call.1} parent=31 // pred_check_branch
          %186 = sbr.rel (%p184) target = $region36
        $region35: #{tpu_custom_call.1} parent=31 // pred_region
          %s187 = sand.u32 %s27, 1
          %s188 = scalar_lea.sflag [#allocation3], %s187
          %s189 = sand.u32 %s27, 1
          %s190 = smul.addr %s189, 16
          %s191 = scalar_lea.vmem [#allocation2], %s190
          %193 = vsyncadd %s188, 0
          %s194 = smul.addr %s17, 2
          %s195 = smul.addr %s194, 8
          %s196 = scalar_lea.hbm %s0, %s195
          %s198 = sshll.u32 %s196, 4
          %s199 = int_to_ptr.hbm [resolvable:$true] %s198
          %s200 = sshll.u32 %s191, 4
          %s201 = int_to_ptr.vmem [resolvable:$true] %s200
          %203 = dma.hbm_to_vmem [thread:$0]  %s199, 256, %s201, %s188
        $region36: #{tpu_custom_call.1} parent=31 // pred_fallthru
          _
      $region32: #{tpu_custom_call.1} parent=5 // pred_fallthru
        _
      %p204 = scmp.le.s32.totalorder 1, %s17
      %p205 = scmp.lt.s32.totalorder %s17, 3
      %p206 = pnand %p204, %p205
      %p207 = pneg %p206
      // Predicated region
      $region37: #{tpu_custom_call.1} parent=5 // pred_check
        _
      $region38: #{tpu_custom_call.1} parent=5 // pred_check_branch
        %209 = sbr.rel (%p206) target = $region40
      $region39: #{tpu_custom_call.1} parent=5 // pred_region
        %s210 = ssub.s32 %s17, 1
        %s211 = sand.u32 %s30, 1
        %s212 = scalar_lea.sflag [#allocation3], %s211
        %s213 = sand.u32 %s30, 1
        %s214 = smul.addr %s213, 16
        %s215 = scalar_lea.vmem [#allocation2], %s214
        // Predicated region
        $region41: #{tpu_custom_call.1} parent=39 // pred_check
          %p216 = pneg %p43
        $region42: #{tpu_custom_call.1} parent=39 // pred_check_branch
          %218 = sbr.rel (%p216) target = $region44
        $region43: #{tpu_custom_call.1} parent=39 // pred_region
          %220 = dma.done %s212, 256
        $region44: #{tpu_custom_call.1} parent=39 // pred_fallthru
          _
        %s221 = sand.u32 %s30, 1
        %s222 = scalar_lea.sflag [#allocation3], %s221
        %s223 = sand.u32 %s30, 1
        %s224 = smul.addr %s223, 16
        %s225 = scalar_lea.vmem [#allocation2], %s224
        %p226 = pneg %p43
        %p227 = pneg %p40
        %p228 = pneg %p64
        %p229 = pneg %p61
        %p230 = pneg %p85
        %p231 = pneg %p82
        %p232 = pneg %p106
        %p233 = pneg %p103
        %p234 = pneg %p127
        %p235 = pneg %p124
        %p236 = pneg %p153
        %p237 = pneg %p150
        %s238 = sand.u32 %s140, 1
        %s239 = scalar_lea.sflag [#allocation4], %s238
        %s240 = sand.u32 %s140, 1
        %s241 = smul.addr %s240, 16
        %s242 = scalar_lea.vmem [#allocation5], %s241
        %v243 = vld [vmem:[%s215] sm:$0xff]
        %v244 = vld [vmem:[%s215 + $0x8] sm:$0xff]
        %v245 = vadd.f32 %v243, %v244
        %246 = vadd.xlane.f32.xlu0 %v245
        %v247 = vpop.xlane.xlu0 %246
        %v248 = vmul.f32 %v243, %v243
        %v249 = vmul.f32 %v244, %v244
        %v250 = vadd.f32 %v248, %v249
        %251 = vadd.xlane.f32.xlu0 %v250
        %v252 = vpop.xlane.xlu0 %251
        %v253 = vld [vmem:[%s3] sm:$0xf]
        %vm254 = vcmask 64512
        %v256 = vsel %vm254, %v253, 0
        %258 = vmatpush.msra.mxu0 0.0
        %259 = vmatpush.msra.mxu0 0.0
        %260 = vmatpush.msra.mxu0 0.0
        %261 = vmatpush.msra.mxu0 0.0
        %262 = vmatpush.msra.mxu0 0.0
        %263 = vmatpush.msra.mxu0 0.0
        %264 = vmatpush.msra.mxu0 0.0
        %265 = vmatpush.msra.mxu0 0.0
        %266 = vmatpush.msra.mxu0 0.0
        %267 = vmatpush.msra.mxu0 0.0
        %268 = vmatpush.msra.mxu0 0.0
        %269 = vmatpush.msra.mxu0 0.0
        %270 = vmatpush.msra.mxu0 0.0
        %271 = vmatpush.msra.mxu0 0.0
        %272 = vmatpush.msra.mxu0 0.0
        %273 = vmatpush.msra.mxu0 %v247
        %274 = vmatmul.f32.gmra.mxu0 %v256
        %v275 = vpop.f32.mrf.mxu0
        %v276 = vadd.f32 0.0, %v275
        %277 = vdwg.mxu0
        %278 = vmatpush.msra.mxu0 0.0
        %279 = vmatpush.msra.mxu0 0.0
        %280 = vmatpush.msra.mxu0 0.0
        %281 = vmatpush.msra.mxu0 0.0
        %282 = vmatpush.msra.mxu0 0.0
        %283 = vmatpush.msra.mxu0 0.0
        %284 = vmatpush.msra.mxu0 0.0
        %285 = vmatpush.msra.mxu0 0.0
        %286 = vmatpush.msra.mxu0 0.0
        %287 = vmatpush.msra.mxu0 0.0
        %288 = vmatpush.msra.mxu0 0.0
        %289 = vmatpush.msra.mxu0 0.0
        %290 = vmatpush.msra.mxu0 0.0
        %291 = vmatpush.msra.mxu0 0.0
        %292 = vmatpush.msra.mxu0 0.0
        %293 = vmatpush.msra.mxu0 %v252
        %294 = vmatmul.f32.gmra.mxu0 %v256
        %v295 = vpop.f32.mrf.mxu0
        %v296 = vadd.f32 0.0, %v295
        %297 = vdwg.mxu0
        %v298 = vmul.f32 %v276, 0.001953125
        %v299 = vmul.f32 %v296, 0.001953125
        %v300 = vmul.f32 %v298, %v298
        %v301 = vsub.f32 %v299, %v300
        %v302 = vmax.f32 %v301, 0.0
        %v303 = vadd.f32 %v302, 1e-05
        %v304 = vrsqrt.pop %v303
        %v305 = vmul.f32 %v304, %v303
        %v306 = vmul.f32 %v305, %v304
        %v307 = vmul.f32 0.5, %v306
        %v308 = vsub.f32 1.5, %v307
        %v309 = vmul.f32 %v304, %v308
        %vm310 = vweird.f32 %v303
        %vm311 = vweird.f32 %v304
        %vm312 = vmor %vm310, %vm311
        %v313 = vsel %vm312, %v304, %v309
        %v314 = vld [vmem:[%s4] sm:$0xff]
        %vm315 = vcmask 31744
        %v317 = vsel %vm315, %v314, 0
        %vm319 = vcmask 1043456
        %v321 = vsel %vm319, %v298, 0
        %323 = vmatpush.msra.mxu0 0.0
        %324 = vmatpush.msra.mxu0 0.0
        %325 = vmatpush.msra.mxu0 0.0
        %326 = vmatpush.msra.mxu0 0.0
        %327 = vmatpush.msra.mxu0 0.0
        %328 = vmatpush.msra.mxu0 0.0
        %329 = vmatpush.msra.mxu0 0.0
        %330 = vmatpush.msra.mxu0 0.0
        %331 = vmatpush.msra.mxu0 0.0
        %332 = vmatpush.msra.mxu0 0.0
        %333 = vmatpush.msra.mxu0 0.0
        %334 = vmatpush.msra.mxu0 0.0
        %335 = vmatpush.msra.mxu0 0.0
        %336 = vmatpush.msra.mxu0 0.0
        %337 = vmatpush.msra.mxu0 0.0
        %338 = vmatpush.msra.mxu0 %v321
        %339 = vmatmul.f32.gmra.mxu0 %v317
        %v340 = vpop.f32.mrf.mxu0
        %v341 = vadd.f32 0.0, %v340
        %342 = vdwg.mxu0
        %v344 = vsel %vm319, %v313, 0
        %346 = vmatpush.msra.mxu0 0.0
        %347 = vmatpush.msra.mxu0 0.0
        %348 = vmatpush.msra.mxu0 0.0
        %349 = vmatpush.msra.mxu0 0.0
        %350 = vmatpush.msra.mxu0 0.0
        %351 = vmatpush.msra.mxu0 0.0
        %352 = vmatpush.msra.mxu0 0.0
        %353 = vmatpush.msra.mxu0 0.0
        %354 = vmatpush.msra.mxu0 0.0
        %355 = vmatpush.msra.mxu0 0.0
        %356 = vmatpush.msra.mxu0 0.0
        %357 = vmatpush.msra.mxu0 0.0
        %358 = vmatpush.msra.mxu0 0.0
        %359 = vmatpush.msra.mxu0 0.0
        %360 = vmatpush.msra.mxu0 0.0
        %361 = vmatpush.msra.mxu0 %v344
        %362 = vmatmul.f32.gmra.mxu0 %v317
        %v363 = vpop.f32.mrf.mxu0
        %v364 = vadd.f32 0.0, %v363
        %365 = vdwg.mxu0
        %v366 = vld [vmem:[%s1] sm:$0xff]
        %v367 = vmul.f32 %v366, %v364
        %v368 = vld [vmem:[%s2] sm:$0xff]
        %v369 = vmul.f32 %v341, %v367
        %v370 = vsub.f32 %v368, %v369
        %372 = vset.pattern.permute.xlu0 0
        %373 = vperm.xlu0 %372, %v367
        %v374 = vpop.permute.xlu0 %373
        %v376 = vmul.f32 %v243, %v374
        %v377 = vmul.f32 %v244, %v374
        %379 = vset.pattern.permute.xlu0 0
        %380 = vperm.xlu0 %379, %v370
        %v381 = vpop.permute.xlu0 %380
        %v383 = vadd.f32 %v376, %v381
        %v384 = vadd.f32 %v377, %v381
        %385 = vst [vmem:[%s242] sm:$0xff] %v383
        %386 = vst [vmem:[%s242 + $0x8] sm:$0xff] %v384
        %s387 = sand.u32 %s140, 1
        %s388 = scalar_lea.sflag [#allocation4], %s387
        %s389 = sand.u32 %s140, 1
        %s390 = smul.addr %s389, 16
        %s391 = scalar_lea.vmem [#allocation5], %s390
        // Predicated region
        $region45: #{tpu_custom_call.1} parent=39 // pred_check
          %p392 = pneg %p150
        $region46: #{tpu_custom_call.1} parent=39 // pred_check_branch
          %394 = sbr.rel (%p392) target = $region48
        $region47: #{tpu_custom_call.1} parent=39 // pred_region
          %396 = vsyncadd %s388, 0
          %s397 = smul.addr %s22, 2
          %s398 = smul.addr %s397, 8
          %s399 = scalar_lea.hbm %s5, %s398
          %s401 = sshll.u32 %s391, 4
          %s402 = int_to_ptr.vmem [resolvable:$true] %s401
          %s403 = sshll.u32 %s399, 4
          %s404 = int_to_ptr.hbm [resolvable:$true] %s403
          %406 = dma.vmem_to_hbm [thread:$0]  %s402, 256, %s404, %s388
        $region48: #{tpu_custom_call.1} parent=39 // pred_fallthru
          _
      $region40: #{tpu_custom_call.1} parent=5 // pred_fallthru
        _
      %p407 = scmp.le.s32.totalorder 2, %s17
      // Predicated region
      $region49: #{tpu_custom_call.1} parent=5 // pred_check
        %p408 = pneg %p407
      $region50: #{tpu_custom_call.1} parent=5 // pred_check_branch
        %410 = sbr.rel (%p408) target = $region52
      $region51: #{tpu_custom_call.1} parent=5 // pred_region
        %s411 = ssub.s32 %s17, 2
        // Predicated region
        $region53: #{tpu_custom_call.1} parent=51 // pred_check
          %p412 = pneg %p156
        $region54: #{tpu_custom_call.1} parent=51 // pred_check_branch
          %414 = sbr.rel (%p412) target = $region56
        $region55: #{tpu_custom_call.1} parent=51 // pred_region
          %s415 = sand.u32 %s141, 1
          %s416 = scalar_lea.sflag [#allocation4], %s415
          %s417 = sand.u32 %s141, 1
          %s418 = smul.addr %s417, 16
          %s419 = scalar_lea.vmem [#allocation5], %s418
          %421 = dma.done %s416, 256
        $region56: #{tpu_custom_call.1} parent=51 // pred_fallthru
          _
      $region52: #{tpu_custom_call.1} parent=5 // pred_fallthru
        _
    $region6: #{tpu_custom_call.1} parent=1 // loop_footer
      %s21 = sadd.s32 1, %s17
    $region7: #{tpu_custom_call.1} parent=1 // loop_footer_branch
      %16 = sbr.rel target = $region3
    $region8: #{tpu_custom_call.1} parent=1 // loop_exit
      _
    %422 = vsyncpa [#allocation3], 1
    %s423 = scalar_lea.sflag [#allocation3], 1
    %424 = vsyncpa %s423, 1
    %425 = vsyncpa [#allocation4], 1
    %s426 = scalar_lea.sflag [#allocation4], 1
    %427 = vsyncpa %s426, 1

</llo_original>
